<compile_context>
chip_gen: v5e
topology: v5e:2x2
jax: 0.10.0
libtpu: 0.0.40
codegen_flags: <defaults>
</compile_context>

<pallas_src>
import math

import jax
import jax.numpy as jnp
from jax.experimental import pallas as pl
from jax.experimental.pallas import tpu as pltpu


def _cdiv(a, b):
    return -(-a // b)


def _round_up(n, m):
    return ((n + m - 1) // m) * m


def _independent_bernoulli_kernel(logits_ref, x_ref, logp_ref, probs_ref):
    l = logits_ref[...].astype(jnp.float32)
    x = x_ref[...].astype(jnp.float32)

    # One transcendental shared by log-prob and sigmoid.
    e = jnp.exp(-jnp.abs(l))                       # EUP exp, e in (0, 1]

    # Numerically-stable Bernoulli(logits) log-prob (matches torch's
    # -binary_cross_entropy_with_logits):
    #   log p(x) = x*l - softplus(l) = x*l - max(l, 0) - log1p(exp(-|l|))
    neg_bce = x * l - jnp.maximum(l, 0.0) - jnp.log1p(e)

    # Independent(..., reinterpreted_batch_ndims=len(event_shape)) sums the
    # per-component log-probs over all event dims (flattened onto the lane axis).
    logp_ref[...] = jnp.sum(neg_bce, axis=-1, keepdims=True)

    # sigmoid(l) = 1/(1+e) if l >= 0 else e/(1+e), reusing e; approx reciprocal
    # is plenty for a bf16 output.
    inv = pl.reciprocal(1.0 + e, approx=True)
    probs_ref[...] = jnp.where(l >= 0.0, inv, e * inv).astype(probs_ref.dtype)


class IndependentBernoulli:
    """JAX/Pallas analogue of the torch IndependentBernoulli layer.

    forward(logits, x) returns (log_prob, probs):
      log_prob : shape batch_shape                  (event dims reduced, f32)
      probs    : shape batch_shape + event_shape    (sigmoid of reshaped logits, bf16)
    """

    def __init__(self, event_shape):
        self.event_shape = list(event_shape)

    def params_size(self):
        return math.prod(self.event_shape)

    # ---- tiling / VMEM planning --------------------------------------------

    @staticmethod
    def _vmem_capacity_bytes():
        try:
            info = pltpu.get_tpu_info()
            cap = int(getattr(info, "vmem_capacity_bytes", 0))
            if cap > 0:
                return cap
        except Exception:
            pass
        return 64 << 20  # conservative fallback (v7x per-TC VMEM)

    def _plan(self, B, E, logits_itemsize, x_itemsize):
        # Raw bytes per batch row per pipeline step:
        #   double-buffered inputs/outputs + f32 elementwise temporaries
        #   (l, x, e, neg_bce, probs) that Mosaic materializes per block.
        io_per_row = (logits_itemsize + x_itemsize + 2) * E + 4  # +bf16 probs, +f32 logp
        tmp_per_row = 5 * 4 * E
        step_per_row = 2 * io_per_row + tmp_per_row

        vmem_cap = self._vmem_capacity_bytes()
        if vmem_cap >= (96 << 20):      # v5e / v6e class (128 MiB VMEM)
            budget, tb_cap = 48 << 20, 4096
        else:                           # v7x class (64 MiB VMEM per TC)
            budget, tb_cap = 24 << 20, 2048

        # Row tile: as large as the budget allows, multiple of 32 (int8 sublane
        # tile for the samples input), capped per generation.
        tb = (budget // max(step_per_row, 1)) // 32 * 32
        tb = max(32, min(tb_cap, tb))

        if B <= tb:
            if B >= 256:
                # Keep >= 2 grid steps so the batch axis software-pipelines and
                # (on v7x) shards across both TensorCores.
                tb = max(32, _round_up(_cdiv(B, 2), 32))
            else:
                # Single block equal to the full array extent (always legal).
                tb = B

        num_tiles = _cdiv(B, tb)

        vmem_limit = int(step_per_row * tb * 1.3)
        vmem_limit = max(vmem_limit, 32 << 20)
        vmem_limit = min(vmem_limit, (vmem_cap * 3) // 4)
        return tb, num_tiles, vmem_limit

    # ---- forward -------------------------------------------------------------

    def forward(self, logits, x):
        E = self.params_size()
        batch_shape = logits.shape[:-1]
        assert logits.shape[-1] == E, "last dim of logits must equal params_size()"
        B = int(math.prod(batch_shape)) if batch_shape else 1

        # No dtype casts and no padding here: both would add full extra HBM
        # passes to a bandwidth-bound kernel. The kernel upcasts internally, so
        # f32 / bf16 logits and int8 / bool / f32 samples are consumed as-is.
        logits2d = logits.reshape(B, E)
        x2d = x.reshape(B, E)

        l_isize = jnp.dtype(logits2d.dtype).itemsize
        x_isize = jnp.dtype(x2d.dtype).itemsize
        tb, num_tiles, vmem_limit = self._plan(B, E, l_isize, x_isize)

        cost = pl.CostEstimate(
            flops=8 * B * E,
            transcendentals=3 * B * E,                       # exp, log1p, reciprocal
            bytes_accessed=B * E * (l_isize + x_isize + 2) + B * 4,
        )

        logp2d, probs2d = pl.pallas_call(
            _independent_bernoulli_kernel,
            out_shape=(
                jax.ShapeDtypeStruct((B, 1), jnp.float32),
                jax.ShapeDtypeStruct((B, E), jnp.bfloat16),
            ),
            grid_spec=pltpu.PrefetchScalarGridSpec(
                num_scalar_prefetch=0,
                grid=(num_tiles,),
                in_specs=[
                    pl.BlockSpec((tb, E), lambda i: (i, 0)),
                    pl.BlockSpec((tb, E), lambda i: (i, 0)),
                ],
                out_specs=[
                    pl.BlockSpec((tb, 1), lambda i: (i, 0)),
                    pl.BlockSpec((tb, E), lambda i: (i, 0)),
                ],
            ),
            compiler_params=pltpu.CompilerParams(
                dimension_semantics=("parallel",),
                vmem_limit_bytes=int(vmem_limit),
            ),
            cost_estimate=cost,
        )(logits2d, x2d)

        log_prob = logp2d[:, 0].reshape(batch_shape)
        probs = probs2d.reshape(tuple(batch_shape) + tuple(self.event_shape))
        return log_prob, probs


# ---- reference & test --------------------------------------------------------


def _reference(logits, x, event_shape):
    """Pure-JAX f32 reference of the distribution math."""
    batch_shape = logits.shape[:-1]
    l = logits.astype(jnp.float32).reshape(tuple(batch_shape) + tuple(event_shape))
    xs = x.astype(jnp.float32).reshape(tuple(batch_shape) + tuple(event_shape))
    logp_elem = xs * l - jax.nn.softplus(l)
    axes = tuple(range(len(batch_shape), len(batch_shape) + len(event_shape)))
    log_prob = jnp.sum(logp_elem, axis=axes)
    probs = jax.nn.sigmoid(l)
    return log_prob, probs


def _run_case(layer, batch_shape, key):
    E = layer.params_size()
    k_logits, k_x = jax.random.split(key)
    logits = jax.random.normal(k_logits, batch_shape + (E,), dtype=jnp.float32)
    # Bernoulli samples are 0/1: carry them at 1 byte/elem to save HBM bandwidth.
    x = jax.random.bernoulli(
        k_x, p=0.5, shape=batch_shape + tuple(layer.event_shape)
    ).astype(jnp.int8)

    log_prob, probs = layer.forward(logits, x)
    log_prob, probs = jax.block_until_ready((log_prob, probs))

    ref_logp, ref_probs = _reference(logits, x, layer.event_shape)
    assert log_prob.shape == batch_shape
    assert probs.shape == batch_shape + tuple(layer.event_shape)
    # log_prob is computed and accumulated in f32 -> tight tolerance.
    assert jnp.allclose(log_prob, ref_logp, atol=2e-3, rtol=1e-4)
    # probs is bf16 output via approx reciprocal -> relaxed tolerance.
    assert jnp.allclose(probs.astype(jnp.float32), ref_probs, atol=1e-2, rtol=1e-2)


if __name__ == "__main__":
    event_shape = [1, 16, 16]                  # tiny MNIST-style image, E = 256
    layer = IndependentBernoulli(event_shape)

    key = jax.random.PRNGKey(0)
    k1, k2 = jax.random.split(key)

    # Small shape consistent with the module (single full-extent block).
    _run_case(layer, (2, 4), k1)
    # Larger, non-multiple-of-tile batch: exercises the ragged multi-step grid
    # (software pipelining + masked boundary block) with no padding pass.
    _run_case(layer, (2053,), k2)

    print("KERNEL_OK")
</pallas_src>

<mosaic_0001>
module attributes {stable_mosaic.version = 11 : i64} {
  func.func @_independent_bernoulli_kernel(%arg0: i32, %arg1: memref<8x256xf32, #tpu.memory_space<vmem>>, %arg2: memref<8x256xi8, #tpu.memory_space<vmem>>, %arg3: memref<8x1xf32, #tpu.memory_space<vmem>>, %arg4: memref<8x256xbf16, #tpu.memory_space<vmem>>) attributes {dimension_semantics = [#tpu.dimension_semantics<parallel>], iteration_bounds = array<i64: 1>, scalar_prefetch = 0 : i64, scratch_operands = 0 : i64, tpu.core_type = #tpu.core_type<tc>, window_params = [{transform_indices = @transform_0, window_bounds = array<i64: 8, 256>}, {transform_indices = @transform_1, window_bounds = array<i64: 8, 256>}, {transform_indices = @transform_2, window_bounds = array<i64: 8, 1>}, {transform_indices = @transform_3, window_bounds = array<i64: 8, 256>}]} {
    %c0 = arith.constant 0 : index
    %c0_0 = arith.constant 0 : index
    %0 = vector.load %arg1[%c0, %c0_0] : memref<8x256xf32, #tpu.memory_space<vmem>>, vector<8x256xf32>
    %c0_1 = arith.constant 0 : index
    %c0_2 = arith.constant 0 : index
    %1 = vector.load %arg2[%c0_1, %c0_2] : memref<8x256xi8, #tpu.memory_space<vmem>>, vector<8x256xi8>
    %2 = arith.sitofp %1 : vector<8x256xi8> to vector<8x256xf32>
    %3 = math.absf %0 : vector<8x256xf32>
    %cst = arith.constant 0.000000e+00 : f32
    %4 = vector.broadcast %cst : f32 to vector<8x256xf32>
    %5 = arith.subf %4, %3 : vector<8x256xf32>
    %6 = math.exp %5 : vector<8x256xf32>
    %7 = arith.mulf %2, %0 : vector<8x256xf32>
    %cst_3 = arith.constant 0.000000e+00 : f32
    %8 = vector.broadcast %cst_3 : f32 to vector<8x256xf32>
    %9 = arith.maximumf %0, %8 : vector<8x256xf32>
    %10 = arith.subf %7, %9 : vector<8x256xf32>
    %11 = math.log1p %6 : vector<8x256xf32>
    %12 = arith.subf %10, %11 : vector<8x256xf32>
    %cst_4 = arith.constant dense<0.000000e+00> : vector<8xf32>
    %13 = vector.multi_reduction <add>, %12, %cst_4 [1] : vector<8x256xf32> to vector<8xf32>
    %14 = vector.shape_cast %13 : vector<8xf32> to vector<8x1xf32>
    %c0_5 = arith.constant 0 : index
    %c0_6 = arith.constant 0 : index
    %15 = vector.load %arg3[%c0_5, %c0_6] : memref<8x1xf32, #tpu.memory_space<vmem>>, vector<8x1xf32>
    tpu.vector_store %arg3[%c0_5, %c0_6], %14 {strides = array<i32>} : memref<8x1xf32, #tpu.memory_space<vmem>>, vector<8x1xf32>,
    %cst_7 = arith.constant 1.000000e+00 : f32
    %16 = vector.broadcast %cst_7 : f32 to vector<8x256xf32>
    %17 = arith.addf %16, %6 : vector<8x256xf32>
    %18 = tpu.reciprocal %17 {approx = true} : vector<8x256xf32> -> vector<8x256xf32>
    %cst_8 = arith.constant 0.000000e+00 : f32
    %19 = vector.broadcast %cst_8 : f32 to vector<8x256xf32>
    %20 = arith.cmpf oge, %0, %19 : vector<8x256xf32>
    %21 = arith.mulf %6, %18 : vector<8x256xf32>
    %22 = arith.select %20, %18, %21 : vector<8x256xi1>, vector<8x256xf32>
    %23 = arith.truncf %22 : vector<8x256xf32> to vector<8x256xbf16>
    %c0_9 = arith.constant 0 : index
    %c0_10 = arith.constant 0 : index
    %24 = vector.load %arg4[%c0_9, %c0_10] : memref<8x256xbf16, #tpu.memory_space<vmem>>, vector<8x256xbf16>
    tpu.vector_store %arg4[%c0_9, %c0_10], %23 {strides = array<i32>} : memref<8x256xbf16, #tpu.memory_space<vmem>>, vector<8x256xbf16>,
    return
  }
  func.func @transform_0(%arg0: i32) -> (i32, i32) {
    %c0_i32 = arith.constant 0 : i32
    %c0_i32_0 = arith.constant 0 : i32
    return %arg0, %c0_i32 : i32, i32
  }
  func.func @transform_1(%arg0: i32) -> (i32, i32) {
    %c0_i32 = arith.constant 0 : i32
    %c0_i32_0 = arith.constant 0 : i32
    return %arg0, %c0_i32 : i32, i32
  }
  func.func @transform_2(%arg0: i32) -> (i32, i32) {
    %c0_i32 = arith.constant 0 : i32
    %c0_i32_0 = arith.constant 0 : i32
    return %arg0, %c0_i32 : i32, i32
  }
  func.func @transform_3(%arg0: i32) -> (i32, i32) {
    %c0_i32 = arith.constant 0 : i32
    %c0_i32_0 = arith.constant 0 : i32
    return %arg0, %c0_i32 : i32, i32
  }
}

</mosaic_0001>

<llo_original>
// kernel: tpu_custom_call.1
$region0: #{tpu_custom_call.1}
  #allocation0 [shape = 'u32[]', space=smem, size = 0x4, offset = 0x4, fixed_abs, tag = 'smem constant byte address 0x4 - core index']
  #allocation1 [shape = 'u32[72,128]{1,0:T(1,128)}', space=vmem, size = 0x9000, scoped, tag = 'internal scratch']
  %s0 = inlined_call_operand.hbm [shape: f32[8,256], index: 0, kind: input, shape index: {}]
  %s1 = inlined_call_operand.hbm [shape: s8[8,256], index: 1, kind: input, shape index: {}]
  %s2 = inlined_call_operand.vmem [shape: f32[8,1], index: 2, kind: output, shape index: {0}]
  %s3 = inlined_call_operand.hbm [shape: bf16[8,256], index: 3, kind: output, shape index: {1}]
  %4 = xla_tuple %s2, %s3
  %s5 = sld [smem:[#allocation0]]
  $region34: #{tpu_custom_call.1} parent=0
    _
  %s7 = ssub.s32 1, %s5
  %s8 = scalar_select 0, %s7, %s5
  $region1: #{tpu_custom_call.1} parent=0
    #allocation2 [shape = 'u8[8192]{0}', space=vmem, size = 0x2000, scoped, tag = 'input window, operand 0, single buffered']
    #allocation3 [shape = 's32[1]{0}', space=sflag, size = 0x4, scoped, tag = 'scoped memory for tpu_custom_call.1']
    #allocation4 [shape = 's32[1]{0}', space=sflag, size = 0x4, scoped, tag = 'scoped memory for tpu_custom_call.1']
    #allocation5 [shape = 'u8[2048]{0}', space=vmem, size = 0x800, scoped, tag = 'input window, operand 1, single buffered']
    #allocation6 [shape = 's32[1]{0}', space=sflag, size = 0x4, scoped, tag = 'scoped memory for tpu_custom_call.1']
    #allocation7 [shape = 'u8[4096]{0}', space=vmem, size = 0x1000, scoped, tag = 'output window, operand 1, single buffered']
    %9 = vsyncpa [#allocation3], 0
    %10 = vsyncpa [#allocation6], 0
    %11 = vsyncpa [#allocation4], 0
    // Predicated region
    $region2: #{tpu_custom_call.1} parent=1 // pred_check
      _
    $region3: #{tpu_custom_call.1} parent=1 // pred_check_branch
      %13 = sbr.rel (0) target = $region5
    $region4: #{tpu_custom_call.1} parent=1 // pred_region
      %15 = vsyncadd [#allocation3], 0
      %s17 = sshll.u32 %s0, 4
      %s18 = int_to_ptr.hbm [resolvable:$true] %s17
      %s19 = sshll.u32 [#allocation2], 4
      %s20 = int_to_ptr.vmem [resolvable:$true] %s19
      %22 = dma.hbm_to_vmem [thread:$0]  %s18, 256, %s20, [#allocation3]
    $region5: #{tpu_custom_call.1} parent=1 // pred_fallthru
      _
    // Predicated region
    $region6: #{tpu_custom_call.1} parent=1 // pred_check
      _
    $region7: #{tpu_custom_call.1} parent=1 // pred_check_branch
      %24 = sbr.rel (0) target = $region9
    $region8: #{tpu_custom_call.1} parent=1 // pred_region
      %26 = vsyncadd [#allocation6], 0
      %s28 = sshll.u32 %s1, 4
      %s29 = int_to_ptr.hbm [resolvable:$true] %s28
      %s30 = sshll.u32 [#allocation5], 4
      %s31 = int_to_ptr.vmem [resolvable:$true] %s30
      %33 = dma.hbm_to_vmem [thread:$0]  %s29, 64, %s31, [#allocation6]
    $region9: #{tpu_custom_call.1} parent=1 // pred_fallthru
      _
    // Predicated region
    $region10: #{tpu_custom_call.1} parent=1 // pred_check
      _
    $region11: #{tpu_custom_call.1} parent=1 // pred_check_branch
      %35 = sbr.rel (0) target = $region13
    $region12: #{tpu_custom_call.1} parent=1 // pred_region
      %37 = dma.done [#allocation3], 256
    $region13: #{tpu_custom_call.1} parent=1 // pred_fallthru
      _
    // Predicated region
    $region14: #{tpu_custom_call.1} parent=1 // pred_check
      _
    $region15: #{tpu_custom_call.1} parent=1 // pred_check_branch
      %39 = sbr.rel (0) target = $region17
    $region16: #{tpu_custom_call.1} parent=1 // pred_region
      %41 = dma.done [#allocation6], 64
    $region17: #{tpu_custom_call.1} parent=1 // pred_fallthru
      _
    %v42 = vld [vmem:[#allocation2] sm:$0xff]
    %v43 = vld [vmem:[#allocation2 + $0x8] sm:$0xff]
    %v44 = vld [vmem:[#allocation5] sm:$0xf]
    %v45 = vunpack.c.0.s8 %v44
    %v46 = vunpack.c.1.s8 %v44
    %v47 = vcvt.s32.f32 %v45
    %v48 = vcvt.s32.f32 %v46
    %v49 = vand.u32 2147483647, %v42
    %v50 = vand.u32 2147483647, %v43
    %v51 = vsub.f32 0.0, %v49
    %v52 = vsub.f32 0.0, %v50
    %v53 = vmul.f32 %v51, 1.442695
    %v54 = vpow.pop %v53
    %v55 = vmul.f32 %v52, 1.442695
    %v56 = vpow.pop %v55
    %v57 = vmul.f32 %v47, %v42
    %v58 = vmul.f32 %v48, %v43
    %v59 = vmax.f32 %v42, 0.0
    %v60 = vmax.f32 %v43, 0.0
    %v61 = vsub.f32 %v57, %v59
    %v62 = vsub.f32 %v58, %v60
    %v63 = vadd.f32 %v54, 1.0
    %v64 = vlog2.pop %v63
    %v65 = vmul.f32 %v64, 0.6931472
    %v66 = vmul.f32 -0.5, %v54
    %v67 = vadd.f32 %v66, 1.0
    %v68 = vmul.f32 %v67, %v54
    %v69 = vand.u32 2147483647, %v54
    %vm70 = vcmp.lt.f32.partialorder %v69, 0.0004427343
    %v71 = vsel %vm70, %v68, %v65
    %v72 = vadd.f32 %v56, 1.0
    %v73 = vlog2.pop %v72
    %v74 = vmul.f32 %v73, 0.6931472
    %v75 = vmul.f32 -0.5, %v56
    %v76 = vadd.f32 %v75, 1.0
    %v77 = vmul.f32 %v76, %v56
    %v78 = vand.u32 2147483647, %v56
    %vm79 = vcmp.lt.f32.partialorder %v78, 0.0004427343
    %v80 = vsel %vm79, %v77, %v74
    %v81 = vsub.f32 %v61, %v71
    %v82 = vsub.f32 %v62, %v80
    %v83 = vadd.f32 %v81, %v82
    %84 = vadd.xlane.f32.xlu0 %v83
    %v85 = vpop.xlane.xlu0 %84
    %vm86 = vcmask 7168
    %87 = vst.msk [vmem:[%s2] sm:$0xff] %vm86, %v85
    %v88 = vadd.f32 %v54, 1.0
    %v89 = vadd.f32 %v56, 1.0
    %v90 = vrcp.pop %v88
    %v91 = vrcp.pop %v89
    %vm92 = vcmp.ge.f32.partialorder %v42, 0.0
    %vm93 = vcmp.ge.f32.partialorder %v43, 0.0
    %v94 = vmul.f32 %v54, %v90
    %v95 = vmul.f32 %v56, %v91
    %v96 = vsel %vm92, %v90, %v94
    %v97 = vsel %vm93, %v91, %v95
    %v98 = vpack.c.bf16 %v97, %v96
    %99 = vst [vmem:[#allocation7] sm:$0xff] %v98
    // Predicated region
    $region18: #{tpu_custom_call.1} parent=1 // pred_check
      _
    $region19: #{tpu_custom_call.1} parent=1 // pred_check_branch
      %101 = sbr.rel (0) target = $region21
    $region20: #{tpu_custom_call.1} parent=1 // pred_region
      _
    $region21: #{tpu_custom_call.1} parent=1 // pred_fallthru
      _
    // Predicated region
    $region22: #{tpu_custom_call.1} parent=1 // pred_check
      _
    $region23: #{tpu_custom_call.1} parent=1 // pred_check_branch
      %103 = sbr.rel (0) target = $region25
    $region24: #{tpu_custom_call.1} parent=1 // pred_region
      %105 = vsyncadd [#allocation4], 0
      %s107 = sshll.u32 [#allocation7], 4
      %s108 = int_to_ptr.vmem [resolvable:$true] %s107
      %s109 = sshll.u32 %s3, 4
      %s110 = int_to_ptr.hbm [resolvable:$true] %s109
      %112 = dma.vmem_to_hbm [thread:$0]  %s108, 128, %s110, [#allocation4]
    $region25: #{tpu_custom_call.1} parent=1 // pred_fallthru
      _
    // Predicated region
    $region26: #{tpu_custom_call.1} parent=1 // pred_check
      _
    $region27: #{tpu_custom_call.1} parent=1 // pred_check_branch
      %114 = sbr.rel (0) target = $region29
    $region28: #{tpu_custom_call.1} parent=1 // pred_region
      _
    $region29: #{tpu_custom_call.1} parent=1 // pred_fallthru
      _
    // Predicated region
    $region30: #{tpu_custom_call.1} parent=1 // pred_check
      _
    $region31: #{tpu_custom_call.1} parent=1 // pred_check_branch
      %116 = sbr.rel (0) target = $region33
    $region32: #{tpu_custom_call.1} parent=1 // pred_region
      %118 = dma.done [#allocation4], 128
    $region33: #{tpu_custom_call.1} parent=1 // pred_fallthru
      _
    %119 = vsyncpa [#allocation3], 1
    %120 = vsyncpa [#allocation6], 1
    %121 = vsyncpa [#allocation4], 1

</llo_original>
